<compile_context>
chip_gen: v7x
topology: tpu7x:2x2x1
jax: 0.10.0
libtpu: 0.0.40
codegen_flags: <defaults>
</compile_context>

<pallas_src>
import jax
import jax.numpy as jnp
import numpy as np
from jax.experimental import pallas as pl
from jax.experimental.pallas import tpu as pltpu


def _bovw_kernel(desc_ref, cent_t_ref, c_sq_ref, seg_ref, out_ref):
    """Nearest-centroid assignment -> per-image histogram -> L2 normalize.

    desc_ref  : (TB, N, D)   f32 descriptors for TB images
    cent_t_ref: (D, Kp)      f32 centroids, pre-transposed, scaled by -2, K padded to Kp
    c_sq_ref  : (1, Kp)      f32 ||c_k||^2, +1e30 for padded (dummy) centroids
    seg_ref   : (TB, TB*N)   bf16 segment matrix: seg[b, j] = 1 iff row j belongs to image b
    out_ref   : (TB, Kp)     f32 normalized histograms (padded lanes are garbage-free zeros
                             only for real clusters; wrapper slices to K)
    """
    TB, N, D = desc_ref.shape
    Kp = cent_t_ref.shape[1]

    # Layout no-op (N % 8 == 0 is guaranteed by the wrapper).
    d = desc_ref[...].reshape(TB * N, D)                                    # (TB*N, D)

    # Squared euclidean distance up to a per-descriptor constant (||d||^2 does
    # not affect the argmin):  dist[n, k] = ||c_k||^2 - 2 <d_n, c_k>.
    # The -2 factor is folded into cent_t_ref by the wrapper.
    dots = jnp.dot(d, cent_t_ref[...], preferred_element_type=jnp.float32)  # (TB*N, Kp)  MXU
    dist = dots + c_sq_ref[...]                                             # (TB*N, Kp)

    # Nearest centroid per descriptor (ties -> lowest index, like sklearn).
    # Padded centroids have dist = +1e30 and can never win.
    idx = jnp.argmin(dist, axis=-1, keepdims=True)                          # (TB*N, 1)

    # One-hot assignment matrix in bf16 (exact for 0/1 values; accumulation f32).
    k_iota = jax.lax.broadcasted_iota(jnp.int32, (TB * N, Kp), 1)
    onehot = (k_iota == idx).astype(jnp.bfloat16)                           # (TB*N, Kp)

    # Per-image histogram as an MXU segment matmul with the hoisted seg matrix.
    hist = jnp.dot(seg_ref[...], onehot, preferred_element_type=jnp.float32)  # (TB, Kp)

    # L2 normalization with the module's 1e-6 epsilon.
    norm = jnp.sqrt(jnp.sum(hist * hist, axis=-1, keepdims=True))           # (TB, 1)
    out_ref[...] = hist * pl.reciprocal(norm + 1e-6, approx=False)


def bovw_features(descriptors, centroids, *, tb=None):
    """descriptors: (B, N, D) f32, centroids: (K, D) f32 -> (B, K) f32."""
    B, N, D = descriptors.shape
    K, D2 = centroids.shape
    assert D == D2
    # Keep the in-kernel (TB, N, D) -> (TB*N, D) reshape a layout no-op.
    assert N % 8 == 0, "N must be a sublane multiple (pad + validity mask otherwise)"

    # Lane-pad clusters to a multiple of 128 (lane-dense dist/one-hot/output).
    Kp = max(128, pl.cdiv(K, 128) * 128)

    # Hoisted + padded centroid data: (-2 * C)^T as (D, Kp) and ||c||^2 as (1, Kp).
    # Padded centroid columns are zero and their squared-norm term is +1e30 so
    # they are guaranteed losers in the argmin.
    cent_f32 = centroids.astype(jnp.float32)
    cent_t = jnp.zeros((D, Kp), jnp.float32).at[:, :K].set((-2.0 * cent_f32).T)
    c_sq = jnp.full((1, Kp), 1e30, jnp.float32).at[0, :K].set(
        jnp.sum(cent_f32 * cent_f32, axis=-1))

    if tb is None:
        # Bound post-matmul vreg pressure: keep tb*N <= ~256 flattened rows per
        # step, but keep the grid >= 2 steps when B >= 2 so both v7x cores work.
        tb = max(1, min(B, 256 // N)) if N <= 256 else 1
        if B >= 2:
            tb = min(tb, max(1, B // 2))

    G = pl.cdiv(B, tb)
    B_pad = G * tb
    desc = descriptors.astype(jnp.float32)
    if B_pad != B:
        desc = jnp.concatenate(
            [desc, jnp.zeros((B_pad - B, N, D), jnp.float32)], axis=0)

    # Hoisted segment matrix (constant across grid steps, held resident):
    # seg[b, j] = 1 iff flattened descriptor row j belongs to image b of the tile.
    seg_np = (np.arange(tb)[:, None] == (np.arange(tb * N)[None, :] // N))
    seg = jnp.asarray(seg_np.astype(np.float32), dtype=jnp.bfloat16)        # (tb, tb*N)

    out = pl.pallas_call(
        _bovw_kernel,
        out_shape=jax.ShapeDtypeStruct((G, tb, Kp), jnp.float32),
        grid_spec=pltpu.PrefetchScalarGridSpec(
            num_scalar_prefetch=0,
            grid=(G,),
            in_specs=[
                pl.BlockSpec((tb, N, D), lambda i: (i, 0, 0)),
                pl.BlockSpec((D, Kp), lambda i: (0, 0)),
                pl.BlockSpec((1, Kp), lambda i: (0, 0)),
                pl.BlockSpec((tb, tb * N), lambda i: (0, 0)),
            ],
            # Leading (grid) dim squeezed; trailing block dims equal the full
            # array dims -> unmasked, lane-dense stores for any tb.
            out_specs=pl.BlockSpec((None, tb, Kp), lambda i: (i, 0, 0)),
        ),
        compiler_params=pltpu.CompilerParams(
            dimension_semantics=("parallel",),
            vmem_limit_bytes=32 * 1024 * 1024),
    )(desc, cent_t, c_sq, seg)

    # Strip batch padding and lane padding.
    return out.reshape(B_pad, Kp)[:B, :K]


def synthetic_sift_descriptors(images, n_desc, key):
    """Deterministic stand-in for OpenCV SIFT descriptor extraction.

    # TODO(synk): OpenCV SIFT keypoint detection/description (and the image
    # preprocessing) are CPU-only and have no Pallas equivalent; replaced by a
    # synthetic descriptor generator that still depends on the input images.
    """
    B = images.shape[0]
    per_img_scale = jnp.mean(images.reshape(B, -1), axis=-1, keepdims=True)  # (B, 1)
    noise = jax.random.normal(key, (B, n_desc, 128), dtype=jnp.float32)
    return jnp.abs(noise + per_img_scale[:, :, None])  # SIFT descriptors are >= 0


def reference_bovw(descriptors, centroids):
    """Pure numpy reference mirroring the torch/sklearn semantics."""
    descriptors = np.asarray(descriptors)
    centroids = np.asarray(centroids)
    B, N, _ = descriptors.shape
    K = centroids.shape[0]
    out = np.zeros((B, K), dtype=np.float32)
    for i in range(B):
        d = descriptors[i]
        dist = ((d[:, None, :] - centroids[None, :, :]) ** 2).sum(-1)
        idx = np.argmin(dist, axis=-1)
        hist = np.zeros(K)
        for j in idx:
            hist[j] += 1
        hist = hist / (np.linalg.norm(hist) + 1e-6)
        out[i] = hist.astype(np.float32)
    return out


if __name__ == "__main__":
    key = jax.random.PRNGKey(0)
    k_img, k_desc, k_cent = jax.random.split(key, 3)

    # Small shapes consistent with the module's forward:
    #   batch of NCHW images, 32 kmeans clusters, 64 SIFT descriptors of dim 128.
    B, C, H, W = 2, 3, 16, 16
    N_DESC, DESC_DIM, N_CLUSTERS = 64, 128, 32

    images = jax.random.normal(k_img, (B, C, H, W), dtype=jnp.float32)
    descriptors = synthetic_sift_descriptors(images, N_DESC, k_desc)
    # Deterministic synthetic kmeans centroids (replaces kmeans.cluster_centers_).
    centroids = jax.random.normal(k_cent, (N_CLUSTERS, DESC_DIM), dtype=jnp.float32)

    feats = bovw_features(descriptors, centroids)
    feats = jax.block_until_ready(feats)

    ref = reference_bovw(descriptors, centroids)
    assert feats.shape == (B, N_CLUSTERS) and feats.dtype == jnp.float32
    np.testing.assert_allclose(np.asarray(feats), ref, rtol=1e-5, atol=1e-5)

    print("KERNEL_OK")
</pallas_src>

<mosaic_0001>
module attributes {stable_mosaic.version = 11 : i64} {
  func.func @_bovw_kernel(%arg0: i32, %arg1: memref<1x64x128xf32, #tpu.memory_space<vmem>>, %arg2: memref<128x128xf32, #tpu.memory_space<vmem>>, %arg3: memref<1x128xf32, #tpu.memory_space<vmem>>, %arg4: memref<1x64xbf16, #tpu.memory_space<vmem>>, %arg5: memref<1x1x128xf32, #tpu.memory_space<vmem>>) attributes {dimension_semantics = [#tpu.dimension_semantics<parallel>], iteration_bounds = array<i64: 2>, scalar_prefetch = 0 : i64, scratch_operands = 0 : i64, tpu.core_type = #tpu.core_type<tc>, window_params = [{transform_indices = @transform_0, window_bounds = array<i64: 1, 64, 128>}, {pipeline_mode = #tpu.pipeline_mode<synchronous>, transform_indices = @transform_1, window_bounds = array<i64: 128, 128>}, {pipeline_mode = #tpu.pipeline_mode<synchronous>, transform_indices = @transform_2, window_bounds = array<i64: 1, 128>}, {pipeline_mode = #tpu.pipeline_mode<synchronous>, transform_indices = @transform_3, window_bounds = array<i64: 1, 64>}, {transform_indices = @transform_4, window_bounds = array<i64: 1, 1, 128>}]} {
    %c0 = arith.constant 0 : index
    %c0_0 = arith.constant 0 : index
    %c0_1 = arith.constant 0 : index
    %0 = vector.load %arg1[%c0, %c0_0, %c0_1] : memref<1x64x128xf32, #tpu.memory_space<vmem>>, vector<1x64x128xf32>
    %1 = vector.shape_cast %0 : vector<1x64x128xf32> to vector<64x128xf32>
    %c0_2 = arith.constant 0 : index
    %c0_3 = arith.constant 0 : index
    %2 = vector.load %arg2[%c0_2, %c0_3] : memref<128x128xf32, #tpu.memory_space<vmem>>, vector<128x128xf32>
    %cst = arith.constant dense<0.000000e+00> : vector<64x128xf32>
    %3 = tpu.matmul %1, %2, %cst {dimension_numbers = #tpu.dot_dimension_numbers<[1], [0], [0], [1], [0, 0, 1, 1], [], []>} : vector<64x128xf32>, vector<128x128xf32>, vector<64x128xf32> -> vector<64x128xf32>
    %c0_4 = arith.constant 0 : index
    %c0_5 = arith.constant 0 : index
    %4 = vector.load %arg3[%c0_4, %c0_5] : memref<1x128xf32, #tpu.memory_space<vmem>>, vector<1x128xf32>
    %5 = vector.broadcast %4 : vector<1x128xf32> to vector<64x128xf32>
    %6 = arith.addf %3, %5 : vector<64x128xf32>
    %7 = tpu.reduce_index %6 {axis = 1 : i32, kind = #tpu.reduction_kind<arg_min>} : vector<64x128xf32> -> vector<64xi32>
    %8 = vector.shape_cast %7 : vector<64xi32> to vector<64x1xi32>
    %9 = tpu.iota {dimensions = array<i32: 1>} : vector<64x128xi32>
    %10 = vector.broadcast %8 : vector<64x1xi32> to vector<64x128xi32>
    %11 = arith.cmpi eq, %9, %10 : vector<64x128xi32>
    %12 = arith.extui %11 : vector<64x128xi1> to vector<64x128xi32>
    %13 = arith.sitofp %12 : vector<64x128xi32> to vector<64x128xf32>
    %14 = arith.truncf %13 : vector<64x128xf32> to vector<64x128xbf16>
    %c0_6 = arith.constant 0 : index
    %c0_7 = arith.constant 0 : index
    %15 = vector.load %arg4[%c0_6, %c0_7] : memref<1x64xbf16, #tpu.memory_space<vmem>>, vector<1x64xbf16>
    %cst_8 = arith.constant dense<0.000000e+00> : vector<1x128xf32>
    %16 = tpu.matmul %15, %14, %cst_8 {dimension_numbers = #tpu.dot_dimension_numbers<[1], [0], [0], [1], [0, 0, 1, 1], [], []>} : vector<1x64xbf16>, vector<64x128xbf16>, vector<1x128xf32> -> vector<1x128xf32>
    %17 = arith.mulf %16, %16 : vector<1x128xf32>
    %cst_9 = arith.constant dense<0.000000e+00> : vector<1xf32>
    %18 = vector.multi_reduction <add>, %17, %cst_9 [1] : vector<1x128xf32> to vector<1xf32>
    %19 = vector.shape_cast %18 : vector<1xf32> to vector<1x1xf32>
    %20 = math.sqrt %19 : vector<1x1xf32>
    %cst_10 = arith.constant 9.99999997E-7 : f32
    %21 = vector.broadcast %cst_10 : f32 to vector<1x1xf32>
    %22 = arith.addf %20, %21 : vector<1x1xf32>
    %23 = tpu.reciprocal %22 : vector<1x1xf32> -> vector<1x1xf32>
    %24 = vector.broadcast %23 : vector<1x1xf32> to vector<1x128xf32>
    %25 = arith.mulf %16, %24 : vector<1x128xf32>
    %c0_11 = arith.constant 0 : index
    %c0_12 = arith.constant 0 : index
    %c0_13 = arith.constant 0 : index
    %26 = vector.load %arg5[%c0_11, %c0_12, %c0_13] : memref<1x1x128xf32, #tpu.memory_space<vmem>>, vector<1x1x128xf32>
    %27 = vector.shape_cast %26 : vector<1x1x128xf32> to vector<1x128xf32>
    %28 = vector.shape_cast %25 : vector<1x128xf32> to vector<1x1x128xf32>
    tpu.vector_store %arg5[%c0_11, %c0_12, %c0_13], %28 {strides = array<i32>} : memref<1x1x128xf32, #tpu.memory_space<vmem>>, vector<1x1x128xf32>,
    return
  }
  func.func @transform_0(%arg0: i32) -> (i32, i32, i32) {
    %c0_i32 = arith.constant 0 : i32
    %c0_i32_0 = arith.constant 0 : i32
    %c0_i32_1 = arith.constant 0 : i32
    return %arg0, %c0_i32, %c0_i32_0 : i32, i32, i32
  }
  func.func @transform_1(%arg0: i32) -> (i32, i32) {
    %c0_i32 = arith.constant 0 : i32
    %c0_i32_0 = arith.constant 0 : i32
    %c0_i32_1 = arith.constant 0 : i32
    return %c0_i32, %c0_i32_0 : i32, i32
  }
  func.func @transform_2(%arg0: i32) -> (i32, i32) {
    %c0_i32 = arith.constant 0 : i32
    %c0_i32_0 = arith.constant 0 : i32
    %c0_i32_1 = arith.constant 0 : i32
    return %c0_i32, %c0_i32_0 : i32, i32
  }
  func.func @transform_3(%arg0: i32) -> (i32, i32) {
    %c0_i32 = arith.constant 0 : i32
    %c0_i32_0 = arith.constant 0 : i32
    %c0_i32_1 = arith.constant 0 : i32
    return %c0_i32, %c0_i32_0 : i32, i32
  }
  func.func @transform_4(%arg0: i32) -> (i32, i32, i32) {
    %c0_i32 = arith.constant 0 : i32
    %c0_i32_0 = arith.constant 0 : i32
    %c0_i32_1 = arith.constant 0 : i32
    return %arg0, %c0_i32, %c0_i32_0 : i32, i32, i32
  }
}

</mosaic_0001>

<llo_original>
// kernel: tpu_custom_call.1
$region0: #{tpu_custom_call.1}
  #allocation0 [shape = 'u32[]', space=smem, size = 0x4, offset = 0x4, fixed_abs, tag = 'smem constant byte address 0x4 - core index']
  #allocation1 [shape = 'u32[144,128]{1,0:T(1,128)}', space=vmem, size = 0x12000, scoped, tag = 'internal scratch']
  %s0 = inlined_call_operand.hbm [shape: f32[2,64,128], index: 0, kind: input, shape index: {}]
  %s1 = inlined_call_operand.hbm [shape: f32[128,128], index: 1, kind: input, shape index: {}]
  %s2 = inlined_call_operand.vmem [shape: f32[1,128], index: 2, kind: input, shape index: {}]
  %s3 = inlined_call_operand.vmem [shape: bf16[1,64], index: 3, kind: input, shape index: {}]
  %s4 = inlined_call_operand.hbm [shape: f32[2,1,128], index: 4, kind: output, shape index: {}]
  %s5 = sld [smem:[#allocation0]]
  $region57: #{tpu_custom_call.1} parent=0
    _
  %s7 = ssub.s32 1, %s5
  %s8 = scalar_select 0, %s7, %s5
  $region1: #{tpu_custom_call.1} parent=0
    #allocation2 [shape = 'u8[65536]{0}', space=vmem, size = 0x10000, scoped, tag = 'input window, operand 0']
    #allocation3 [shape = 's32[2]{0}', space=sflag, size = 0x8, scoped, tag = 'scoped memory for tpu_custom_call.1']
    #allocation4 [shape = 's32[2]{0}', space=sflag, size = 0x8, scoped, tag = 'scoped memory for tpu_custom_call.1']
    #allocation5 [shape = 'u8[65536]{0}', space=vmem, size = 0x10000, scoped, tag = 'input window, operand 1, single buffered']
    #allocation6 [shape = 's32[1]{0}', space=sflag, size = 0x4, scoped, tag = 'scoped memory for tpu_custom_call.1']
    #allocation7 [shape = 'u8[1024]{0}', space=vmem, size = 0x400, scoped, tag = 'output window, operand 0']
    %9 = vsyncpa [#allocation3], 0
    %s10 = scalar_lea.sflag [#allocation3], 1
    %11 = vsyncpa %s10, 0
    %12 = vsyncpa [#allocation6], 0
    %13 = vsyncpa [#allocation4], 0
    %s14 = scalar_lea.sflag [#allocation4], 1
    %15 = vsyncpa %s14, 0
    loop: start=0, step=1, limit=4
    $region2: #{tpu_custom_call.1} parent=1 // loop_pre_header
      _
    $region3: #{tpu_custom_call.1} parent=1 // loop_header
      %s17 = sphi 0, %s21
      %p18 = scmp.ge.s32.totalorder %s17, 4
      %s27 = sphi 0, %s29
      %s30 = sphi 0, %s27
      %s31 = sphi 0, %s30
      %s47 = sphi 0, %s31
      %s51 = sphi 0, %s51
      %s53 = sphi 0, %s51
      %s54 = sphi 0, %s53
      %s68 = sphi 0, %s54
      %s72 = sphi 0, %s72
      %s74 = sphi 0, %s72
      %s75 = sphi 0, %s74
      %s89 = sphi 0, %s75
      %s93 = sphi 0, %s93
      %s95 = sphi 0, %s93
      %s96 = sphi 0, %s95
      %s110 = sphi 0, %s96
      %s116 = sphi 0, %s118
      %s119 = sphi 0, %s116
      %s120 = sphi 0, %s119
      %s136 = sphi 0, %s120
    $region4: #{tpu_custom_call.1} parent=1 // loop_header_branch
      %20 = sbr.rel (%p18) target = $region8
    $region5: #{tpu_custom_call.1} parent=1 // loop_body
      %s22 = ssub.s32 %s17, 1
      %s23 = ssub.s32 %s17, 2
      %s24 = sadd.s32 %s17, 1
      %s25 = ssub.s32 %s17, %s24
      %p26 = scmp.eq.s32.totalorder %s25, 0
      %s28 = sadd.s32 %s27, 1
      %s29 = scalar_select %p26, %s27, %s28
      %p32 = pneg %p26
      %p33 = scmp.eq.s32.totalorder %s17, 1
      %p34 = por %p32, %p33
      %p35 = scmp.ne.s32.totalorder %s27, %s30
      %p36 = scmp.eq.s32.totalorder %s17, 0
      %p37 = por %p35, %p36
      %p38 = scmp.ne.s32.totalorder %s27, %s30
      %p39 = scmp.eq.s32.totalorder %s22, 1
      %p40 = por %p38, %p39
      %p41 = scmp.ne.s32.totalorder %s30, %s31
      %p42 = scmp.eq.s32.totalorder %s22, 0
      %p43 = por %p41, %p42
      %p44 = scmp.ne.s32.totalorder %s30, %s31
      %p45 = scmp.eq.s32.totalorder %s23, 1
      %p46 = por %p44, %p45
      %p48 = scmp.ne.s32.totalorder %s31, %s47
      %p49 = scmp.eq.s32.totalorder %s23, 0
      %p50 = por %p48, %p49
      %s52 = sadd.s32 %s51, 1
      %p55 = scmp.eq.s32.totalorder %s17, 1
      %p56 = scmp.ne.s32.totalorder %s51, %s53
      %p57 = scmp.eq.s32.totalorder %s17, 0
      %p58 = por %p56, %p57
      %p59 = scmp.ne.s32.totalorder %s51, %s53
      %p60 = scmp.eq.s32.totalorder %s22, 1
      %p61 = por %p59, %p60
      %p62 = scmp.ne.s32.totalorder %s53, %s54
      %p63 = scmp.eq.s32.totalorder %s22, 0
      %p64 = por %p62, %p63
      %p65 = scmp.ne.s32.totalorder %s53, %s54
      %p66 = scmp.eq.s32.totalorder %s23, 1
      %p67 = por %p65, %p66
      %p69 = scmp.ne.s32.totalorder %s54, %s68
      %p70 = scmp.eq.s32.totalorder %s23, 0
      %p71 = por %p69, %p70
      %s73 = sadd.s32 %s72, 1
      %p76 = scmp.eq.s32.totalorder %s17, 1
      %p77 = scmp.ne.s32.totalorder %s72, %s74
      %p78 = scmp.eq.s32.totalorder %s17, 0
      %p79 = por %p77, %p78
      %p80 = scmp.ne.s32.totalorder %s72, %s74
      %p81 = scmp.eq.s32.totalorder %s22, 1
      %p82 = por %p80, %p81
      %p83 = scmp.ne.s32.totalorder %s74, %s75
      %p84 = scmp.eq.s32.totalorder %s22, 0
      %p85 = por %p83, %p84
      %p86 = scmp.ne.s32.totalorder %s74, %s75
      %p87 = scmp.eq.s32.totalorder %s23, 1
      %p88 = por %p86, %p87
      %p90 = scmp.ne.s32.totalorder %s75, %s89
      %p91 = scmp.eq.s32.totalorder %s23, 0
      %p92 = por %p90, %p91
      %s94 = sadd.s32 %s93, 1
      %p97 = scmp.eq.s32.totalorder %s17, 1
      %p98 = scmp.ne.s32.totalorder %s93, %s95
      %p99 = scmp.eq.s32.totalorder %s17, 0
      %p100 = por %p98, %p99
      %p101 = scmp.ne.s32.totalorder %s93, %s95
      %p102 = scmp.eq.s32.totalorder %s22, 1
      %p103 = por %p101, %p102
      %p104 = scmp.ne.s32.totalorder %s95, %s96
      %p105 = scmp.eq.s32.totalorder %s22, 0
      %p106 = por %p104, %p105
      %p107 = scmp.ne.s32.totalorder %s95, %s96
      %p108 = scmp.eq.s32.totalorder %s23, 1
      %p109 = por %p107, %p108
      %p111 = scmp.ne.s32.totalorder %s96, %s110
      %p112 = scmp.eq.s32.totalorder %s23, 0
      %p113 = por %p111, %p112
      %s114 = ssub.s32 %s17, %s24
      %p115 = scmp.eq.s32.totalorder %s114, 0
      %s117 = sadd.s32 %s116, 1
      %s118 = scalar_select %p115, %s116, %s117
      %p121 = pneg %p115
      %p122 = scmp.eq.s32.totalorder %s17, 1
      %p123 = por %p121, %p122
      %p124 = scmp.ne.s32.totalorder %s116, %s119
      %p125 = scmp.eq.s32.totalorder %s17, 0
      %p126 = por %p124, %p125
      %p127 = scmp.ne.s32.totalorder %s116, %s119
      %p128 = scmp.eq.s32.totalorder %s22, 1
      %p129 = por %p127, %p128
      %p130 = scmp.ne.s32.totalorder %s119, %s120
      %p131 = scmp.eq.s32.totalorder %s22, 0
      %p132 = por %p130, %p131
      %p133 = scmp.ne.s32.totalorder %s119, %s120
      %p134 = scmp.eq.s32.totalorder %s23, 1
      %p135 = por %p133, %p134
      %p137 = scmp.ne.s32.totalorder %s120, %s136
      %p138 = scmp.eq.s32.totalorder %s23, 0
      %p139 = por %p137, %p138
      %p140 = scmp.le.s32.totalorder 1, %s17
      %p141 = scmp.lt.s32.totalorder %s17, 3
      %p142 = pnand %p140, %p141
      %p143 = pneg %p142
      // Predicated region
      $region9: #{tpu_custom_call.1} parent=5 // pred_check
        _
      $region10: #{tpu_custom_call.1} parent=5 // pred_check_branch
        %145 = sbr.rel (%p142) target = $region12
      $region11: #{tpu_custom_call.1} parent=5 // pred_region
        %s146 = ssub.s32 %s17, 1
        // Predicated region
        $region13: #{tpu_custom_call.1} parent=11 // pred_check
          %p147 = pneg %p64
        $region14: #{tpu_custom_call.1} parent=11 // pred_check_branch
          %149 = sbr.rel (%p147) target = $region16
        $region15: #{tpu_custom_call.1} parent=11 // pred_region
          %s151 = ssub.s32 2048, 2048
          %152 = vsyncadd [#allocation6], %s151
          %s153 = sshll.u32 [#allocation5], 4
          %s154 = int_to_ptr.vmem [resolvable:$true] %s153
          %159 = dma.hbm_to_vmem [thread:$0]  %s1, 2048, %s154, [#allocation6], 128, 128, 8
        $region16: #{tpu_custom_call.1} parent=11 // pred_fallthru
          _
        // Predicated region
        $region17: #{tpu_custom_call.1} parent=11 // pred_check
          %p160 = pneg %p85
        $region18: #{tpu_custom_call.1} parent=11 // pred_check_branch
          %162 = sbr.rel (%p160) target = $region20
        $region19: #{tpu_custom_call.1} parent=11 // pred_region
          _
        $region20: #{tpu_custom_call.1} parent=11 // pred_fallthru
          _
        // Predicated region
        $region21: #{tpu_custom_call.1} parent=11 // pred_check
          %p163 = pneg %p106
        $region22: #{tpu_custom_call.1} parent=11 // pred_check_branch
          %165 = sbr.rel (%p163) target = $region24
        $region23: #{tpu_custom_call.1} parent=11 // pred_region
          _
        $region24: #{tpu_custom_call.1} parent=11 // pred_fallthru
          _
      $region12: #{tpu_custom_call.1} parent=5 // pred_fallthru
        _
      %p166 = scmp.lt.s32.totalorder %s17, 2
      // Predicated region
      $region25: #{tpu_custom_call.1} parent=5 // pred_check
        %p167 = pneg %p166
      $region26: #{tpu_custom_call.1} parent=5 // pred_check_branch
        %169 = sbr.rel (%p167) target = $region28
      $region27: #{tpu_custom_call.1} parent=5 // pred_region
        // Predicated region
        $region29: #{tpu_custom_call.1} parent=27 // pred_check
          %p170 = pneg %p37
        $region30: #{tpu_custom_call.1} parent=27 // pred_check_branch
          %172 = sbr.rel (%p170) target = $region32
        $region31: #{tpu_custom_call.1} parent=27 // pred_region
          %s173 = sand.u32 %s27, 1
          %s174 = scalar_lea.sflag [#allocation3], %s173
          %s175 = sand.u32 %s27, 1
          %s176 = smul.addr %s175, 64
          %s177 = scalar_lea.vmem [#allocation2], %s176
          %s179 = ssub.s32 1024, 1024
          %180 = vsyncadd %s174, %s179
          %s181 = smul.addr %s17, 8
          %s182 = smul.addr %s181, 128
          %s183 = scalar_lea.hbm %s0, %s182
          %s184 = sshll.u32 %s177, 4
          %s185 = int_to_ptr.vmem [resolvable:$true] %s184
          %190 = dma.hbm_to_vmem [thread:$0]  %s183, 1024, %s185, %s174, 128, 128, 8
        $region32: #{tpu_custom_call.1} parent=27 // pred_fallthru
          _
      $region28: #{tpu_custom_call.1} parent=5 // pred_fallthru
        _
      %p191 = scmp.le.s32.totalorder 1, %s17
      %p192 = scmp.lt.s32.totalorder %s17, 3
      %p193 = pnand %p191, %p192
      %p194 = pneg %p193
      // Predicated region
      $region33: #{tpu_custom_call.1} parent=5 // pred_check
        _
      $region34: #{tpu_custom_call.1} parent=5 // pred_check_branch
        %196 = sbr.rel (%p193) target = $region36
      $region35: #{tpu_custom_call.1} parent=5 // pred_region
        %s197 = ssub.s32 %s17, 1
        %s198 = sand.u32 %s30, 1
        %s199 = scalar_lea.sflag [#allocation3], %s198
        %s200 = sand.u32 %s30, 1
        %s201 = smul.addr %s200, 64
        %s202 = scalar_lea.vmem [#allocation2], %s201
        // Predicated region
        $region37: #{tpu_custom_call.1} parent=35 // pred_check
          %p203 = pneg %p43
        $region38: #{tpu_custom_call.1} parent=35 // pred_check_branch
          %205 = sbr.rel (%p203) target = $region40
        $region39: #{tpu_custom_call.1} parent=35 // pred_region
          %206 = dma.done %s199, 1024
        $region40: #{tpu_custom_call.1} parent=35 // pred_fallthru
          _
        // Predicated region
        $region41: #{tpu_custom_call.1} parent=35 // pred_check
          %p207 = pneg %p64
        $region42: #{tpu_custom_call.1} parent=35 // pred_check_branch
          %209 = sbr.rel (%p207) target = $region44
        $region43: #{tpu_custom_call.1} parent=35 // pred_region
          %210 = dma.done [#allocation6], 2048
        $region44: #{tpu_custom_call.1} parent=35 // pred_fallthru
          _
        %s211 = sand.u32 %s30, 1
        %s212 = scalar_lea.sflag [#allocation3], %s211
        %s213 = sand.u32 %s30, 1
        %s214 = smul.addr %s213, 64
        %s215 = scalar_lea.vmem [#allocation2], %s214
        %p216 = pneg %p43
        %p217 = pneg %p40
        %p218 = pneg %p64
        %p219 = pneg %p61
        %p220 = pneg %p85
        %p221 = pneg %p82
        %p222 = pneg %p106
        %p223 = pneg %p103
        %p224 = pneg %p132
        %p225 = pneg %p129
        %s226 = sand.u32 %s119, 1
        %s227 = scalar_lea.sflag [#allocation4], %s226
        %s228 = sand.u32 %s119, 1
        %s229 = scalar_lea.vmem [#allocation7], %s228
        %v231 = vld [vmem:[%s202] sm:$0xff]
        %v232 = vld [vmem:[%s202 + $0x8] sm:$0xff]
        %v233 = vld [vmem:[%s202 + $0x10] sm:$0xff]
        %v234 = vld [vmem:[%s202 + $0x18] sm:$0xff]
        %v235 = vld [vmem:[%s202 + $0x20] sm:$0xff]
        %v236 = vld [vmem:[%s202 + $0x28] sm:$0xff]
        %v237 = vld [vmem:[%s202 + $0x30] sm:$0xff]
        %v238 = vld [vmem:[%s202 + $0x38] sm:$0xff]
        %v239 = vld [vmem:[#allocation5] sm:$0xff]
        %v240 = vld [vmem:[#allocation5 + $0x8] sm:$0xff]
        %v241 = vld [vmem:[#allocation5 + $0x10] sm:$0xff]
        %v242 = vld [vmem:[#allocation5 + $0x18] sm:$0xff]
        %v243 = vld [vmem:[#allocation5 + $0x20] sm:$0xff]
        %v244 = vld [vmem:[#allocation5 + $0x28] sm:$0xff]
        %v245 = vld [vmem:[#allocation5 + $0x30] sm:$0xff]
        %v246 = vld [vmem:[#allocation5 + $0x38] sm:$0xff]
        %v247 = vld [vmem:[#allocation5 + $0x40] sm:$0xff]
        %v248 = vld [vmem:[#allocation5 + $0x48] sm:$0xff]
        %v249 = vld [vmem:[#allocation5 + $0x50] sm:$0xff]
        %v250 = vld [vmem:[#allocation5 + $0x58] sm:$0xff]
        %v251 = vld [vmem:[#allocation5 + $0x60] sm:$0xff]
        %v252 = vld [vmem:[#allocation5 + $0x68] sm:$0xff]
        %v253 = vld [vmem:[#allocation5 + $0x70] sm:$0xff]
        %v254 = vld [vmem:[#allocation5 + $0x78] sm:$0xff]
        %v255 = vld [vmem:[%s2] sm:$0x1]
        %v257 = vlaneseq
        %v258 = vshrl.u32 %v257, 7
        %v259 = vsub.s32 0, %v258
        %v260 = vrot.slane %v255, %v259
        %262 = vmatprep.subr.mxu0 0.0
        %263 = vmatpush1.msra.mxu0 %v239
        %264 = vmatprep.subr.mxu0 0.0
        %265 = vmatpush1.msra.mxu0 %v240
        %266 = vmatprep.subr.mxu0 0.0
        %267 = vmatpush1.msra.mxu0 %v241
        %268 = vmatprep.subr.mxu0 0.0
        %269 = vmatpush1.msra.mxu0 %v242
        %270 = vmatprep.subr.mxu0 0.0
        %271 = vmatpush1.msra.mxu0 %v243
        %272 = vmatprep.subr.mxu0 0.0
        %273 = vmatpush1.msra.mxu0 %v244
        %274 = vmatprep.subr.mxu0 0.0
        %275 = vmatpush1.msra.mxu0 %v245
        %276 = vmatprep.subr.mxu0 0.0
        %277 = vmatpush1.msra.mxu0 %v246
        %278 = vmatprep.subr.mxu0 0.0
        %279 = vmatpush1.msra.mxu0 %v247
        %280 = vmatprep.subr.mxu0 0.0
        %281 = vmatpush1.msra.mxu0 %v248
        %282 = vmatprep.subr.mxu0 0.0
        %283 = vmatpush1.msra.mxu0 %v249
        %284 = vmatprep.subr.mxu0 0.0
        %285 = vmatpush1.msra.mxu0 %v250
        %286 = vmatprep.subr.mxu0 0.0
        %287 = vmatpush1.msra.mxu0 %v251
        %288 = vmatprep.subr.mxu0 0.0
        %289 = vmatpush1.msra.mxu0 %v252
        %290 = vmatprep.subr.mxu0 0.0
        %291 = vmatpush1.msra.mxu0 %v253
        %292 = vmatprep.subr.mxu0 0.0
        %293 = vmatpush1.msra.mxu0 %v254
        %294 = vmatprep.subr.mxu0 0.0
        %295 = vmatpush1.msra.mxu0 0.0
        %296 = vmatprep.subr.mxu0 0.0
        %297 = vmatpush1.msra.mxu0 0.0
        %298 = vmatprep.subr.mxu0 0.0
        %299 = vmatpush1.msra.mxu0 0.0
        %300 = vmatprep.subr.mxu0 0.0
        %301 = vmatpush1.msra.mxu0 0.0
        %302 = vmatprep.subr.mxu0 0.0
        %303 = vmatpush1.msra.mxu0 0.0
        %304 = vmatprep.subr.mxu0 0.0
        %305 = vmatpush1.msra.mxu0 0.0
        %306 = vmatprep.subr.mxu0 0.0
        %307 = vmatpush1.msra.mxu0 0.0
        %308 = vmatprep.subr.mxu0 0.0
        %309 = vmatpush1.msra.mxu0 0.0
        %310 = vmatprep.subr.mxu0 0.0
        %311 = vmatpush1.msra.mxu0 0.0
        %312 = vmatprep.subr.mxu0 0.0
        %313 = vmatpush1.msra.mxu0 0.0
        %314 = vmatprep.subr.mxu0 0.0
        %315 = vmatpush1.msra.mxu0 0.0
        %316 = vmatprep.subr.mxu0 0.0
        %317 = vmatpush1.msra.mxu0 0.0
        %318 = vmatprep.subr.mxu0 0.0
        %319 = vmatpush1.msra.mxu0 0.0
        %320 = vmatprep.subr.mxu0 0.0
        %321 = vmatpush1.msra.mxu0 0.0
        %322 = vmatprep.subr.mxu0 0.0
        %323 = vmatpush1.msra.mxu0 0.0
        %324 = vmatprep.subr.mxu0 0.0
        %325 = vmatpush1.msra.mxu0 0.0
        %326 = vmatprep.mubr.f32.mxu0 0.0
        %327 = vmatmul.mubr.f32.gmra.mrb[0].mxu0 %v231
        %v328 = vpop.f32.mrb[0].mxu0
        %v329 = vadd.f32 %v260, %v328
        %v330 = vpop.f32.mrb[0].mxu0
        %331 = vmatprep.mubr.f32.mxu0 0.0
        %332 = vmatmul.mubr.f32.gmra.mrb[0].mxu0 %v232
        %v333 = vpop.f32.mrb[0].mxu0
        %v334 = vadd.f32 %v260, %v333
        %v335 = vpop.f32.mrb[0].mxu0
        %336 = vmatprep.mubr.f32.mxu0 0.0
        %337 = vmatmul.mubr.f32.gmra.mrb[0].mxu0 %v233
        %v338 = vpop.f32.mrb[0].mxu0
        %v339 = vadd.f32 %v260, %v338
        %v340 = vpop.f32.mrb[0].mxu0
        %341 = vmatprep.mubr.f32.mxu0 0.0
        %342 = vmatmul.mubr.f32.gmra.mrb[0].mxu0 %v234
        %v343 = vpop.f32.mrb[0].mxu0
        %v344 = vadd.f32 %v260, %v343
        %v345 = vpop.f32.mrb[0].mxu0
        %346 = vmatprep.mubr.f32.mxu0 0.0
        %347 = vmatmul.mubr.f32.gmra.mrb[0].mxu0 %v235
        %v348 = vpop.f32.mrb[0].mxu0
        %v349 = vadd.f32 %v260, %v348
        %v350 = vpop.f32.mrb[0].mxu0
        %351 = vmatprep.mubr.f32.mxu0 0.0
        %352 = vmatmul.mubr.f32.gmra.mrb[0].mxu0 %v236
        %v353 = vpop.f32.mrb[0].mxu0
        %v354 = vadd.f32 %v260, %v353
        %v355 = vpop.f32.mrb[0].mxu0
        %356 = vmatprep.mubr.f32.mxu0 0.0
        %357 = vmatmul.mubr.f32.gmra.mrb[0].mxu0 %v237
        %v358 = vpop.f32.mrb[0].mxu0
        %v359 = vadd.f32 %v260, %v358
        %v360 = vpop.f32.mrb[0].mxu0
        %361 = vmatprep.mubr.f32.mxu0 0.0
        %362 = vmatmul.mubr.f32.gmra.mrb[0].mxu0 %v238
        %v363 = vpop.f32.mrb[0].mxu0
        %v364 = vadd.f32 %v260, %v363
        %v365 = vpop.f32.mrb[0].mxu0
        %366 = vdwg.mxu0
        %367 = vmin.index.xlane.f32.xlu0 %v329
        %v368 = vpop.xlane.xlu0 %367
        %369 = vmin.index.xlane.f32.xlu0 %v334
        %v370 = vpop.xlane.xlu0 %369
        %371 = vmin.index.xlane.f32.xlu0 %v339
        %v372 = vpop.xlane.xlu0 %371
        %373 = vmin.index.xlane.f32.xlu0 %v344
        %v374 = vpop.xlane.xlu0 %373
        %375 = vmin.index.xlane.f32.xlu0 %v349
        %v376 = vpop.xlane.xlu0 %375
        %377 = vmin.index.xlane.f32.xlu0 %v354
        %v378 = vpop.xlane.xlu0 %377
        %379 = vmin.index.xlane.f32.xlu0 %v359
        %v380 = vpop.xlane.xlu0 %379
        %381 = vmin.index.xlane.f32.xlu0 %v364
        %v382 = vpop.xlane.xlu0 %381
        %v383 = vlaneseq
        %v384 = vand.u32 %v383, 127
        %vm385 = vcmp.eq.s32.totalorder %v384, %v368
        %vm386 = vcmp.eq.s32.totalorder %v384, %v370
        %vm387 = vcmp.eq.s32.totalorder %v384, %v372
        %vm388 = vcmp.eq.s32.totalorder %v384, %v374
        %vm389 = vcmp.eq.s32.totalorder %v384, %v376
        %vm390 = vcmp.eq.s32.totalorder %v384, %v378
        %vm391 = vcmp.eq.s32.totalorder %v384, %v380
        %vm392 = vcmp.eq.s32.totalorder %v384, %v382
        %v393 = vsel %vm385, 1, 0
        %v394 = vsel %vm386, 1, 0
        %v395 = vsel %vm387, 1, 0
        %v396 = vsel %vm388, 1, 0
        %v397 = vsel %vm389, 1, 0
        %v398 = vsel %vm390, 1, 0
        %v399 = vsel %vm391, 1, 0
        %v400 = vsel %vm392, 1, 0
        %v401 = vcvt.s32.f32 %v393
        %v402 = vcvt.s32.f32 %v394
        %v403 = vcvt.s32.f32 %v395
        %v404 = vcvt.s32.f32 %v396
        %v405 = vcvt.s32.f32 %v397
        %v406 = vcvt.s32.f32 %v398
        %v407 = vcvt.s32.f32 %v399
        %v408 = vcvt.s32.f32 %v400
        %v409 = vpack.c.bf16 %v402, %v401
        %v410 = vpack.c.bf16 %v404, %v403
        %v411 = vpack.c.bf16 %v406, %v405
        %v412 = vpack.c.bf16 %v408, %v407
        %v413 = vld [vmem:[%s3] sm:$0x1]
        %vm414 = vcmask 523264
        %v416 = vsel %vm414, %v413, 0
        %418 = vmatprep.subr.bf16.mxu0 0
        %419 = vmatpush1.bf16.msra.mxu0 %v409
        %420 = vmatprep.subr.bf16.mxu0 0
        %421 = vmatpush1.bf16.msra.mxu0 %v410
        %422 = vmatprep.subr.bf16.mxu0 0
        %423 = vmatpush1.bf16.msra.mxu0 %v411
        %424 = vmatprep.subr.bf16.mxu0 0
        %425 = vmatpush1.bf16.msra.mxu0 %v412
        %426 = vmatprep.subr.bf16.mxu0 0
        %427 = vmatpush1.bf16.msra.mxu0 0
        %428 = vmatprep.subr.bf16.mxu0 0
        %429 = vmatpush1.bf16.msra.mxu0 0
        %430 = vmatprep.subr.bf16.mxu0 0
        %431 = vmatpush1.bf16.msra.mxu0 0
        %432 = vmatprep.subr.bf16.mxu0 0
        %433 = vmatpush1.bf16.msra.mxu0 0
        %434 = vmatprep.subr.bf16.mxu0 0
        %435 = vmatpush1.bf16.msra.mxu0 0
        %436 = vmatprep.subr.bf16.mxu0 0
        %437 = vmatpush1.bf16.msra.mxu0 0
        %438 = vmatprep.subr.bf16.mxu0 0
        %439 = vmatpush1.bf16.msra.mxu0 0
        %440 = vmatprep.subr.bf16.mxu0 0
        %441 = vmatpush1.bf16.msra.mxu0 0
        %442 = vmatprep.subr.bf16.mxu0 0
        %443 = vmatpush1.bf16.msra.mxu0 0
        %444 = vmatprep.subr.bf16.mxu0 0
        %445 = vmatpush1.bf16.msra.mxu0 0
        %446 = vmatprep.subr.bf16.mxu0 0
        %447 = vmatpush1.bf16.msra.mxu0 0
        %448 = vmatprep.subr.bf16.mxu0 0
        %449 = vmatpush1.bf16.msra.mxu0 0
        %450 = vmatprep.mubr.bf16.mxu0 0
        %451 = vmatmul.mubr.bf16.gmra.mrb[0].mxu0 %v416
        %v452 = vpop.f32.mrb[0].mxu0
        %v453 = vadd.f32 0.0, %v452
        %v454 = vpop.f32.mrb[0].mxu0
        %v455 = vpop.f32.mrb[0].mxu0
        %v456 = vpop.f32.mrb[0].mxu0
        %457 = vdwg.mxu0
        %v458 = vmul.f32 %v453, %v453
        %vm459 = vcmask 1040384
        %v460 = vsel %vm459, %v458, 0.0
        %461 = vadd.xlane.f32.xlu0 %v460
        %v462 = vpop.xlane.xlu0 %461
        %v463 = vrsqrt.pop %v462
        %v464 = vmul.f32 %v462, %v463
        %vm465 = vcmp.eq.f32.partialorder %v462, inf
        %v466 = vsel %vm465, %v462, %v464
        %vm467 = vcmp.eq.f32.partialorder %v462, 0.0
        %v468 = vand.u32 %v462, 2147483648
        %v469 = vsel %vm467, %v468, %v466
        %v470 = vadd.f32 %v469, 1e-06
        %v471 = vrcp.pop %v470
        %v472 = vmul.f32 %v453, %v471
        %473 = vst [vmem:[%s229] sm:$0x1] %v472
        %s474 = sand.u32 %s119, 1
        %s475 = scalar_lea.sflag [#allocation4], %s474
        %s476 = sand.u32 %s119, 1
        %s477 = scalar_lea.vmem [#allocation7], %s476
        // Predicated region
        $region45: #{tpu_custom_call.1} parent=35 // pred_check
          %p478 = pneg %p129
        $region46: #{tpu_custom_call.1} parent=35 // pred_check_branch
          %480 = sbr.rel (%p478) target = $region48
        $region47: #{tpu_custom_call.1} parent=35 // pred_region
          %s482 = ssub.s32 16, 16
          %483 = vsyncadd %s475, %s482
          %s484 = smul.addr %s22, 16
          %s485 = scalar_lea.hbm %s4, %s484
          %s487 = sshll.u32 %s477, 4
          %s488 = int_to_ptr.vmem [resolvable:$true] %s487
          %490 = dma.vmem_to_hbm [thread:$0]  %s488, 16, %s485, %s475
        $region48: #{tpu_custom_call.1} parent=35 // pred_fallthru
          _
      $region36: #{tpu_custom_call.1} parent=5 // pred_fallthru
        _
      %p491 = scmp.le.s32.totalorder 2, %s17
      // Predicated region
      $region49: #{tpu_custom_call.1} parent=5 // pred_check
        %p492 = pneg %p491
      $region50: #{tpu_custom_call.1} parent=5 // pred_check_branch
        %494 = sbr.rel (%p492) target = $region52
      $region51: #{tpu_custom_call.1} parent=5 // pred_region
        %s495 = ssub.s32 %s17, 2
        // Predicated region
        $region53: #{tpu_custom_call.1} parent=51 // pred_check
          %p496 = pneg %p135
        $region54: #{tpu_custom_call.1} parent=51 // pred_check_branch
          %498 = sbr.rel (%p496) target = $region56
        $region55: #{tpu_custom_call.1} parent=51 // pred_region
          %s499 = sand.u32 %s120, 1
          %s500 = scalar_lea.sflag [#allocation4], %s499
          %s501 = sand.u32 %s120, 1
          %s502 = scalar_lea.vmem [#allocation7], %s501
          %503 = dma.done %s500, 16
        $region56: #{tpu_custom_call.1} parent=51 // pred_fallthru
          _
      $region52: #{tpu_custom_call.1} parent=5 // pred_fallthru
        _
    $region6: #{tpu_custom_call.1} parent=1 // loop_footer
      %s21 = sadd.s32 1, %s17
    $region7: #{tpu_custom_call.1} parent=1 // loop_footer_branch
      %16 = sbr.rel target = $region3
    $region8: #{tpu_custom_call.1} parent=1 // loop_exit
      _
    %504 = vsyncpa [#allocation3], 1
    %s505 = scalar_lea.sflag [#allocation3], 1
    %506 = vsyncpa %s505, 1
    %507 = vsyncpa [#allocation6], 1
    %508 = vsyncpa [#allocation4], 1
    %s509 = scalar_lea.sflag [#allocation4], 1
    %510 = vsyncpa %s509, 1

</llo_original>
